<compile_context>
chip_gen: v5e
topology: v5e:2x2
jax: 0.10.0
libtpu: 0.0.40
codegen_flags: <defaults>
</compile_context>

<pallas_src>
import functools

import jax
import jax.numpy as jnp
from jax import lax
from jax.experimental import pallas as pl
from jax.experimental.pallas import tpu as pltpu

SCALE = 20.0   # module default: scale=20.0
ALPHA = 0.1    # module default: alpha=0.1


def _normalize(x):
    # matches torch.nn.functional.normalize(x, p=2, dim=1, eps=1e-12):
    # x / max(||x||, 1e-12) == x * rsqrt(max(||x||^2, 1e-24))
    ssq = jnp.sum(x * x, axis=-1, keepdims=True)
    return x * lax.rsqrt(jnp.maximum(ssq, jnp.float32(1e-24)))


def _loss_kernel(q_ref, ht_ref, lt_ref, out_ref):
    # q_ref:  (block_q, D)  pre-normalized, pre-scaled query tile (mm dtype)
    # ht_ref: (D, B)        pre-normalized human docs, transposed (mm dtype)
    # lt_ref: (D, B)        pre-normalized llm docs,   transposed (mm dtype)
    block_q = q_ref.shape[0]
    B = ht_ref.shape[1]
    start = pl.multiple_of(pl.program_id(0) * block_q, block_q)

    q = q_ref[...]
    dn = (((1,), (0,)), ((), ()))  # natural [M,K] x [K,N] MXU contraction
    human = lax.dot_general(q, ht_ref[...], dn,
                            preferred_element_type=jnp.float32)   # [bq, B]
    llm = lax.dot_general(q, lt_ref[...], dn,
                          preferred_element_type=jnp.float32)     # [bq, B]

    # Diagonal mask for this tile: global row index == column index.
    rows = start + lax.broadcasted_iota(jnp.int32, (block_q, B), 0)
    cols = lax.broadcasted_iota(jnp.int32, (block_q, B), 1)
    is_diag = rows == cols
    zero = jnp.float32(0.0)

    # Positive (diagonal) scores, taken straight from the similarity matrices
    # so they are exactly consistent with the negatives.
    human_pos = jnp.sum(jnp.where(is_diag, human, zero), axis=-1, keepdims=True)
    llm_pos = jnp.sum(jnp.where(is_diag, llm, zero), axis=-1, keepdims=True)

    # Shared-stabilizer LSE.  scores_1 = [human_pos, human_offdiag, llm_offdiag]
    #                         scores_2 = [llm_pos,   human_offdiag, llm_offdiag]
    # m >= every entry of both rows, so all exp arguments are <= 0 (stable).
    m = jnp.maximum(jnp.max(human, axis=-1, keepdims=True),
                    jnp.max(llm, axis=-1, keepdims=True))          # [bq, 1]
    e_h = jnp.exp(human - m)
    e_l = jnp.exp(llm - m)
    # Off-diagonal sums with the diagonal zeroed out -> no cancellation.
    neg_sum = (jnp.sum(jnp.where(is_diag, zero, e_h), axis=-1, keepdims=True)
               + jnp.sum(jnp.where(is_diag, zero, e_l), axis=-1, keepdims=True))

    lse1 = m + jnp.log(jnp.exp(human_pos - m) + neg_sum)
    lse2 = m + jnp.log(jnp.exp(llm_pos - m) + neg_sum)

    # CrossEntropyLoss(label=0): lse - positive score.
    # MarginRankingLoss(margin=0, target=+1): max(0, llm_pos - human_pos).
    per_row = ((lse1 - human_pos) + (lse2 - llm_pos)
               + jnp.float32(ALPHA) * jnp.maximum(llm_pos - human_pos, 0.0))

    out_ref[0, 0] = jnp.sum(per_row)   # partial sum; wrapper divides by B


def _pick_block_q(batch):
    # largest power-of-two divisor from the ladder (fills the MXU, amortizes the
    # ~0.35us per-step overhead), shrunk if the [bq,B] f32 intermediates would
    # blow the VMEM budget for very large batches.
    best = batch
    for cand in (256, 128, 64, 32, 16, 8):
        if batch % cand == 0:
            best = cand
            break
    while best > 8 and best % 2 == 0 and 6 * best * batch * 4 > (24 << 20):
        best //= 2
    return best


def _resident_spec(shape):
    # Grid-invariant doc operands: constant index_map, single-buffered so the
    # resident footprint is 1x (matters on v7x's 64 MiB VMEM).
    try:
        return pl.BlockSpec(shape, lambda i: (0, 0), pipeline_mode=pl.Buffered(1))
    except Exception:  # pragma: no cover - older jax without pipeline_mode
        return pl.BlockSpec(shape, lambda i: (0, 0))


@functools.partial(jax.jit, static_argnames=("block_q", "mm_dtype"))
def debiased_mnr_loss(query_rep, human_doc_rep, llm_doc_rep, *,
                      block_q=None, mm_dtype=jnp.bfloat16):
    B, D = query_rep.shape
    if block_q is None:
        block_q = _pick_block_q(B)
    assert B % block_q == 0
    num_tiles = B // block_q

    # Hoisted preprocessing (one fused XLA pass each, done once for the whole
    # batch instead of once per grid step inside the kernel):
    #   * L2-normalize all three embedding matrices in f32,
    #   * fold SCALE into the queries (saves two [bq,B] VALU passes per tile),
    #   * pre-transpose docs to (D, B) so the kernel rhs is a natural [K,N]
    #     operand and the [bq,B] output stays lane-dense,
    #   * cast matmul operands to bf16 for full-rate MXU (VPU math stays f32).
    qn = (_normalize(query_rep.astype(jnp.float32))
          * jnp.float32(SCALE)).astype(mm_dtype)
    ht = _normalize(human_doc_rep.astype(jnp.float32)).T.astype(mm_dtype)
    lt = _normalize(llm_doc_rep.astype(jnp.float32)).T.astype(mm_dtype)

    # Explicit VMEM budget: resident docs (single-buffered) + double-buffered
    # query tile + the [bq,B] f32 intermediates, with generous headroom.
    mm_bytes = jnp.dtype(mm_dtype).itemsize
    needed = (2 * D * B * mm_bytes          # both resident doc matrices
              + 2 * block_q * D * mm_bytes  # double-buffered query tile
              + 8 * block_q * B * 4)        # human/llm/e_h/e_l + temporaries
    vmem_limit = int(min(max(2 * needed + (8 << 20), 16 << 20), 60 << 20))

    partials = pl.pallas_call(
        _loss_kernel,
        out_shape=jax.ShapeDtypeStruct((num_tiles, 1), jnp.float32),
        grid=(num_tiles,),
        in_specs=[
            pl.BlockSpec((block_q, D), lambda i: (i, 0)),  # query tile (pipelined)
            _resident_spec((D, B)),                         # human docs, resident
            _resident_spec((D, B)),                         # llm docs, resident
        ],
        out_specs=pl.BlockSpec((1, 1), lambda i: (i, 0),
                               memory_space=pltpu.MemorySpace.SMEM),
        compiler_params=pltpu.CompilerParams(
            dimension_semantics=("parallel",),
            vmem_limit_bytes=vmem_limit),
    )(qn, ht, lt)

    # All three reduction terms are means over the batch.
    return jnp.sum(partials) / jnp.float32(B)


def _reference_loss(q, h, l):
    # pure-JAX reference mirroring the PyTorch forward (f32, exact matmul)
    def norm(x):
        n = jnp.sqrt(jnp.sum(x * x, axis=-1, keepdims=True))
        return x / jnp.maximum(n, 1e-12)

    human = jnp.matmul(norm(q), norm(h).T,
                       precision=lax.Precision.HIGHEST) * SCALE
    llm = jnp.matmul(norm(q), norm(l).T,
                     precision=lax.Precision.HIGHEST) * SCALE
    B = human.shape[0]
    eye = jnp.eye(B, dtype=bool)
    human_pos = jnp.diagonal(human)[:, None]
    llm_pos = jnp.diagonal(llm)[:, None]
    human_negs = jnp.where(eye, -jnp.inf, human)   # -inf == excluded from LSE
    llm_negs = jnp.where(eye, -jnp.inf, llm)
    scores_1 = jnp.concatenate([human_pos, human_negs, llm_negs], axis=1)
    scores_2 = jnp.concatenate([llm_pos, human_negs, llm_negs], axis=1)
    ce1 = jnp.mean(jax.scipy.special.logsumexp(scores_1, axis=1) - scores_1[:, 0])
    ce2 = jnp.mean(jax.scipy.special.logsumexp(scores_2, axis=1) - scores_2[:, 0])
    constraint = jnp.mean(jnp.maximum(0.0, llm_pos - human_pos))
    return ce1 + ce2 + ALPHA * constraint


if __name__ == "__main__":
    B, D = 8, 32
    key = jax.random.PRNGKey(0)
    kq, kh, kl = jax.random.split(key, 3)
    query_rep = jax.random.normal(kq, (B, D), dtype=jnp.float32)
    human_doc_rep = jax.random.normal(kh, (B, D), dtype=jnp.float32)
    llm_doc_rep = jax.random.normal(kl, (B, D), dtype=jnp.float32)

    ref = _reference_loss(query_rep, human_doc_rep, llm_doc_rep)

    # Exactness check of the kernel math (f32 MXU operands, tight tolerance).
    loss_f32 = jax.block_until_ready(
        debiased_mnr_loss(query_rep, human_doc_rep, llm_doc_rep,
                          mm_dtype=jnp.float32))
    assert jnp.allclose(loss_f32, ref, rtol=1e-4, atol=1e-4), (loss_f32, ref)

    # Default fast path: bf16 MXU operands (expected quantization vs f32 ref).
    loss_bf16 = jax.block_until_ready(
        debiased_mnr_loss(query_rep, human_doc_rep, llm_doc_rep))
    assert jnp.allclose(loss_bf16, ref, rtol=5e-2, atol=5e-2), (loss_bf16, ref)

    print("KERNEL_OK")
</pallas_src>

<mosaic_0001>
module attributes {stable_mosaic.version = 11 : i64} {
  func.func @_loss_kernel(%arg0: i32, %arg1: memref<8x32xf32, #tpu.memory_space<vmem>>, %arg2: memref<32x8xf32, #tpu.memory_space<vmem>>, %arg3: memref<32x8xf32, #tpu.memory_space<vmem>>, %arg4: memref<1x1xf32, #tpu.memory_space<smem>>) attributes {dimension_semantics = [#tpu.dimension_semantics<parallel>], iteration_bounds = array<i64: 1>, scalar_prefetch = 0 : i64, scratch_operands = 0 : i64, tpu.core_type = #tpu.core_type<tc>, window_params = [{transform_indices = @transform_0, window_bounds = array<i64: 8, 32>}, {pipeline_mode = #tpu.pipeline_mode<synchronous>, transform_indices = @transform_1, window_bounds = array<i64: 32, 8>}, {pipeline_mode = #tpu.pipeline_mode<synchronous>, transform_indices = @transform_2, window_bounds = array<i64: 32, 8>}, {transform_indices = @transform_3, window_bounds = array<i64: 1, 1>}]} {
    %c8_i32 = arith.constant 8 : i32
    %0 = arith.muli %arg0, %c8_i32 : i32
    %1 = tpu.assume_multiple %0, 8 : i32
    %c0 = arith.constant 0 : index
    %c0_0 = arith.constant 0 : index
    %2 = vector.load %arg1[%c0, %c0_0] : memref<8x32xf32, #tpu.memory_space<vmem>>, vector<8x32xf32>
    %c0_1 = arith.constant 0 : index
    %c0_2 = arith.constant 0 : index
    %3 = vector.load %arg2[%c0_1, %c0_2] : memref<32x8xf32, #tpu.memory_space<vmem>>, vector<32x8xf32>
    %cst = arith.constant dense<0.000000e+00> : vector<8x8xf32>
    %4 = tpu.matmul %2, %3, %cst {dimension_numbers = #tpu.dot_dimension_numbers<[1], [0], [0], [1], [0, 0, 1, 1], [], []>} : vector<8x32xf32>, vector<32x8xf32>, vector<8x8xf32> -> vector<8x8xf32>
    %c0_3 = arith.constant 0 : index
    %c0_4 = arith.constant 0 : index
    %5 = vector.load %arg3[%c0_3, %c0_4] : memref<32x8xf32, #tpu.memory_space<vmem>>, vector<32x8xf32>
    %cst_5 = arith.constant dense<0.000000e+00> : vector<8x8xf32>
    %6 = tpu.matmul %2, %5, %cst_5 {dimension_numbers = #tpu.dot_dimension_numbers<[1], [0], [0], [1], [0, 0, 1, 1], [], []>} : vector<8x32xf32>, vector<32x8xf32>, vector<8x8xf32> -> vector<8x8xf32>
    %7 = tpu.iota {dimensions = array<i32: 0>} : vector<8x8xi32>
    %8 = vector.broadcast %1 : i32 to vector<8x8xi32>
    %9 = arith.addi %8, %7 : vector<8x8xi32>
    %10 = tpu.iota {dimensions = array<i32: 1>} : vector<8x8xi32>
    %11 = arith.cmpi eq, %9, %10 : vector<8x8xi32>
    %cst_6 = arith.constant 0.000000e+00 : f32
    %12 = vector.broadcast %cst_6 : f32 to vector<8x8xf32>
    %13 = arith.select %11, %4, %12 : vector<8x8xi1>, vector<8x8xf32>
    %cst_7 = arith.constant dense<0.000000e+00> : vector<8xf32>
    %14 = vector.multi_reduction <add>, %13, %cst_7 [1] : vector<8x8xf32> to vector<8xf32>
    %15 = vector.shape_cast %14 : vector<8xf32> to vector<8x1xf32>
    %cst_8 = arith.constant 0.000000e+00 : f32
    %16 = vector.broadcast %cst_8 : f32 to vector<8x8xf32>
    %17 = arith.select %11, %6, %16 : vector<8x8xi1>, vector<8x8xf32>
    %cst_9 = arith.constant dense<0.000000e+00> : vector<8xf32>
    %18 = vector.multi_reduction <add>, %17, %cst_9 [1] : vector<8x8xf32> to vector<8xf32>
    %19 = vector.shape_cast %18 : vector<8xf32> to vector<8x1xf32>
    %cst_10 = arith.constant dense<0xFF800000> : vector<8xf32>
    %20 = vector.multi_reduction <maximumf>, %4, %cst_10 [1] : vector<8x8xf32> to vector<8xf32>
    %21 = vector.shape_cast %20 : vector<8xf32> to vector<8x1xf32>
    %cst_11 = arith.constant dense<0xFF800000> : vector<8xf32>
    %22 = vector.multi_reduction <maximumf>, %6, %cst_11 [1] : vector<8x8xf32> to vector<8xf32>
    %23 = vector.shape_cast %22 : vector<8xf32> to vector<8x1xf32>
    %24 = arith.maximumf %21, %23 : vector<8x1xf32>
    %25 = vector.broadcast %24 : vector<8x1xf32> to vector<8x8xf32>
    %26 = arith.subf %4, %25 : vector<8x8xf32>
    %27 = math.exp %26 : vector<8x8xf32>
    %28 = vector.broadcast %24 : vector<8x1xf32> to vector<8x8xf32>
    %29 = arith.subf %6, %28 : vector<8x8xf32>
    %30 = math.exp %29 : vector<8x8xf32>
    %cst_12 = arith.constant 0.000000e+00 : f32
    %31 = vector.broadcast %cst_12 : f32 to vector<8x8xf32>
    %32 = arith.select %11, %31, %27 : vector<8x8xi1>, vector<8x8xf32>
    %cst_13 = arith.constant dense<0.000000e+00> : vector<8xf32>
    %33 = vector.multi_reduction <add>, %32, %cst_13 [1] : vector<8x8xf32> to vector<8xf32>
    %34 = vector.shape_cast %33 : vector<8xf32> to vector<8x1xf32>
    %cst_14 = arith.constant 0.000000e+00 : f32
    %35 = vector.broadcast %cst_14 : f32 to vector<8x8xf32>
    %36 = arith.select %11, %35, %30 : vector<8x8xi1>, vector<8x8xf32>
    %cst_15 = arith.constant dense<0.000000e+00> : vector<8xf32>
    %37 = vector.multi_reduction <add>, %36, %cst_15 [1] : vector<8x8xf32> to vector<8xf32>
    %38 = vector.shape_cast %37 : vector<8xf32> to vector<8x1xf32>
    %39 = arith.addf %34, %38 : vector<8x1xf32>
    %40 = arith.subf %15, %24 : vector<8x1xf32>
    %41 = math.exp %40 : vector<8x1xf32>
    %42 = arith.addf %41, %39 : vector<8x1xf32>
    %43 = math.log %42 : vector<8x1xf32>
    %44 = arith.addf %24, %43 : vector<8x1xf32>
    %45 = arith.subf %19, %24 : vector<8x1xf32>
    %46 = math.exp %45 : vector<8x1xf32>
    %47 = arith.addf %46, %39 : vector<8x1xf32>
    %48 = math.log %47 : vector<8x1xf32>
    %49 = arith.addf %24, %48 : vector<8x1xf32>
    %50 = arith.subf %44, %15 : vector<8x1xf32>
    %51 = arith.subf %49, %19 : vector<8x1xf32>
    %52 = arith.addf %50, %51 : vector<8x1xf32>
    %53 = arith.subf %19, %15 : vector<8x1xf32>
    %cst_16 = arith.constant 0.000000e+00 : f32
    %54 = vector.broadcast %cst_16 : f32 to vector<8x1xf32>
    %55 = arith.maximumf %53, %54 : vector<8x1xf32>
    %cst_17 = arith.constant 1.000000e-01 : f32
    %56 = vector.broadcast %cst_17 : f32 to vector<8x1xf32>
    %57 = arith.mulf %56, %55 : vector<8x1xf32>
    %58 = arith.addf %52, %57 : vector<8x1xf32>
    %59 = vector.shape_cast %58 : vector<8x1xf32> to vector<1x8x1xf32>
    %cst_18 = arith.constant dense<0.000000e+00> : vector<1xf32>
    %60 = vector.multi_reduction <add>, %59, %cst_18 [1, 2] : vector<1x8x1xf32> to vector<1xf32>
    %61 = vector.shape_cast %60 : vector<1xf32> to vector<1x1x1xf32>
    %62 = vector.extract %61[0, 0, 0] : f32 from vector<1x1x1xf32>
    %c0_19 = arith.constant 0 : index
    %c0_20 = arith.constant 0 : index
    %63 = memref.load %arg4[%c0_19, %c0_20] : memref<1x1xf32, #tpu.memory_space<smem>>
    memref.store %62, %arg4[%c0_19, %c0_20] : memref<1x1xf32, #tpu.memory_space<smem>>
    return
  }
  func.func @transform_0(%arg0: i32) -> (i32, i32) {
    %c0_i32 = arith.constant 0 : i32
    %c0_i32_0 = arith.constant 0 : i32
    return %arg0, %c0_i32 : i32, i32
  }
  func.func @transform_1(%arg0: i32) -> (i32, i32) {
    %c0_i32 = arith.constant 0 : i32
    %c0_i32_0 = arith.constant 0 : i32
    %c0_i32_1 = arith.constant 0 : i32
    return %c0_i32, %c0_i32_0 : i32, i32
  }
  func.func @transform_2(%arg0: i32) -> (i32, i32) {
    %c0_i32 = arith.constant 0 : i32
    %c0_i32_0 = arith.constant 0 : i32
    %c0_i32_1 = arith.constant 0 : i32
    return %c0_i32, %c0_i32_0 : i32, i32
  }
  func.func @transform_3(%arg0: i32) -> (i32, i32) {
    %c0_i32 = arith.constant 0 : i32
    %c0_i32_0 = arith.constant 0 : i32
    return %arg0, %c0_i32 : i32, i32
  }
}

</mosaic_0001>

<llo_original>
// kernel: debiased_mnr_loss.1
$region0: #{debiased_mnr_loss.1}
  #allocation0 [shape = 'u32[]', space=smem, size = 0x4, offset = 0x4, fixed_abs, tag = 'smem constant byte address 0x4 - core index']
  #allocation1 [shape = 'u32[72,128]{1,0:T(1,128)}', space=vmem, size = 0x9000, scoped, tag = 'internal scratch']
  %s0 = inlined_call_operand.vmem [shape: f32[8,32], index: 0, kind: input, shape index: {}]
  %s1 = inlined_call_operand.vmem [shape: f32[32,8], index: 1, kind: input, shape index: {}]
  %s2 = inlined_call_operand.vmem [shape: f32[32,8], index: 2, kind: input, shape index: {}]
  %s3 = inlined_call_operand.hbm [shape: f32[1,1], index: 3, kind: output, shape index: {}]
  %s4 = sld [smem:[#allocation0]]
  $region22: #{debiased_mnr_loss.1} parent=0
    _
  %s6 = ssub.s32 1, %s4
  %s7 = scalar_select 0, %s6, %s4
  $region1: #{debiased_mnr_loss.1} parent=0
    #allocation2 [shape = 'u8[512]{0}', space=smem, size = 0x200, scoped, tag = 'output window, operand 0, single buffered']
    #allocation3 [shape = 's32[1]{0}', space=sflag, size = 0x4, scoped, tag = 'scoped memory for debiased_mnr_loss.1']
    %8 = vsyncpa [#allocation3], 0
    // Predicated region
    $region2: #{debiased_mnr_loss.1} parent=1 // pred_check
      _
    $region3: #{debiased_mnr_loss.1} parent=1 // pred_check_branch
      %10 = sbr.rel (0) target = $region5
    $region4: #{debiased_mnr_loss.1} parent=1 // pred_region
      _
    $region5: #{debiased_mnr_loss.1} parent=1 // pred_fallthru
      _
    // Predicated region
    $region6: #{debiased_mnr_loss.1} parent=1 // pred_check
      _
    $region7: #{debiased_mnr_loss.1} parent=1 // pred_check_branch
      %12 = sbr.rel (0) target = $region9
    $region8: #{debiased_mnr_loss.1} parent=1 // pred_region
      _
    $region9: #{debiased_mnr_loss.1} parent=1 // pred_fallthru
      _
    // Predicated region
    $region10: #{debiased_mnr_loss.1} parent=1 // pred_check
      _
    $region11: #{debiased_mnr_loss.1} parent=1 // pred_check_branch
      %14 = sbr.rel (0) target = $region13
    $region12: #{debiased_mnr_loss.1} parent=1 // pred_region
      _
    $region13: #{debiased_mnr_loss.1} parent=1 // pred_fallthru
      _
    %s15 = smul.u32 0, 8
    %v16 = vld [vmem:[%s0] sm:$0xff]
    %v17 = vld [vmem:[%s1] sm:$0xff]
    %v18 = vld [vmem:[%s1 + $0x8] sm:$0xff]
    %v19 = vld [vmem:[%s1 + $0x10] sm:$0xff]
    %v20 = vld [vmem:[%s1 + $0x18] sm:$0xff]
    %vm21 = vcmask 261120
    %v23 = vsel %vm21, %v16, 0
    %25 = vmatpush.msra.mxu0 0.0
    %26 = vmatpush.msra.mxu0 0.0
    %27 = vmatpush.msra.mxu0 0.0
    %28 = vmatpush.msra.mxu0 0.0
    %29 = vmatpush.msra.mxu0 0.0
    %30 = vmatpush.msra.mxu0 0.0
    %31 = vmatpush.msra.mxu0 0.0
    %32 = vmatpush.msra.mxu0 0.0
    %33 = vmatpush.msra.mxu0 0.0
    %34 = vmatpush.msra.mxu0 0.0
    %35 = vmatpush.msra.mxu0 0.0
    %36 = vmatpush.msra.mxu0 0.0
    %37 = vmatpush.msra.mxu0 %v20
    %38 = vmatpush.msra.mxu0 %v19
    %39 = vmatpush.msra.mxu0 %v18
    %40 = vmatpush.msra.mxu0 %v17
    %41 = vmatmul.f32.gmra.mxu0 %v23
    %v42 = vpop.f32.mrf.mxu0
    %v43 = vadd.f32 0.0, %v42
    %44 = vdwg.mxu0
    %v45 = vld [vmem:[%s2] sm:$0xff]
    %v46 = vld [vmem:[%s2 + $0x8] sm:$0xff]
    %v47 = vld [vmem:[%s2 + $0x10] sm:$0xff]
    %v48 = vld [vmem:[%s2 + $0x18] sm:$0xff]
    %49 = vmatpush.msra.mxu0 0.0
    %50 = vmatpush.msra.mxu0 0.0
    %51 = vmatpush.msra.mxu0 0.0
    %52 = vmatpush.msra.mxu0 0.0
    %53 = vmatpush.msra.mxu0 0.0
    %54 = vmatpush.msra.mxu0 0.0
    %55 = vmatpush.msra.mxu0 0.0
    %56 = vmatpush.msra.mxu0 0.0
    %57 = vmatpush.msra.mxu0 0.0
    %58 = vmatpush.msra.mxu0 0.0
    %59 = vmatpush.msra.mxu0 0.0
    %60 = vmatpush.msra.mxu0 0.0
    %61 = vmatpush.msra.mxu0 %v48
    %62 = vmatpush.msra.mxu0 %v47
    %63 = vmatpush.msra.mxu0 %v46
    %64 = vmatpush.msra.mxu0 %v45
    %65 = vmatmul.f32.gmra.mxu0 %v23
    %v66 = vpop.f32.mrf.mxu0
    %v67 = vadd.f32 0.0, %v66
    %68 = vdwg.mxu0
    %v69 = vlaneseq
    %v70 = vshrl.u32 %v69, 7
    %v71 = vstv %s15
    %v72 = vadd.s32 %v71, %v70
    %v73 = vlaneseq
    %v74 = vand.u32 %v73, 127
    %vm75 = vcmp.eq.s32.totalorder %v72, %v74
    %v76 = vsel %vm75, %v43, 0.0
    %vm77 = vcmask 64512
    %v78 = vsel %vm77, %v76, 0.0
    %79 = vadd.xlane.f32.xlu0 %v78
    %v80 = vpop.xlane.xlu0 %79
    %v81 = vsel %vm75, %v67, 0.0
    %v82 = vsel %vm77, %v81, 0.0
    %83 = vadd.xlane.f32.xlu0 %v82
    %v84 = vpop.xlane.xlu0 %83
    %v85 = vsel %vm77, %v43, -inf
    %86 = vmax.xlane.f32.xlu0 %v85
    %v87 = vpop.xlane.xlu0 %86
    %v88 = vsel %vm77, %v67, -inf
    %89 = vmax.xlane.f32.xlu0 %v88
    %v90 = vpop.xlane.xlu0 %89
    %v91 = vmax.f32 %v87, %v90
    %v92 = vsub.f32 %v43, %v91
    %v93 = vmul.f32 %v92, 1.442695
    %v94 = vpow.pop %v93
    %v95 = vsub.f32 %v67, %v91
    %v96 = vmul.f32 %v95, 1.442695
    %v97 = vpow.pop %v96
    %v98 = vsel %vm75, 0.0, %v94
    %v99 = vsel %vm77, %v98, 0.0
    %100 = vadd.xlane.f32.xlu0 %v99
    %v101 = vpop.xlane.xlu0 %100
    %v102 = vsel %vm75, 0.0, %v97
    %v103 = vsel %vm77, %v102, 0.0
    %104 = vadd.xlane.f32.xlu0 %v103
    %v105 = vpop.xlane.xlu0 %104
    %v106 = vadd.f32 %v101, %v105
    %v107 = vsub.f32 %v80, %v91
    %v108 = vmul.f32 %v107, 1.442695
    %v109 = vpow.pop %v108
    %v110 = vadd.f32 %v109, %v106
    %v111 = vlog2.pop %v110
    %v112 = vmul.f32 %v111, 0.6931472
    %v113 = vadd.f32 %v91, %v112
    %v114 = vsub.f32 %v84, %v91
    %v115 = vmul.f32 %v114, 1.442695
    %v116 = vpow.pop %v115
    %v117 = vadd.f32 %v116, %v106
    %v118 = vlog2.pop %v117
    %v119 = vmul.f32 %v118, 0.6931472
    %v120 = vadd.f32 %v91, %v119
    %v121 = vsub.f32 %v113, %v80
    %v122 = vsub.f32 %v120, %v84
    %v123 = vadd.f32 %v121, %v122
    %v124 = vsub.f32 %v84, %v80
    %v125 = vmax.f32 %v124, 0.0
    %v126 = vmul.f32 %v125, 0.1
    %v127 = vadd.f32 %v123, %v126
    %vm128 = vcmask 7168
    %v129 = vsel %vm128, %v127, 0.0
    %130 = vadd.xlane.f32.xlu0 %v129
    %v131 = vpop.xlane.xlu0 %130
    %v132 = vrot.slane %v131, 4
    %v133 = vadd.f32 %v131, %v132
    %v134 = vrot.slane %v133, 2
    %v135 = vadd.f32 %v133, %v134
    %v136 = vrot.slane %v135, 1
    %v137 = vadd.f32 %v135, %v136
    %s138 = vtos %v137
    %s139 = scalar_lea.smem [#allocation2], 0
    %140 = sst [smem:[%s139]] %s138
    // Predicated region
    $region14: #{debiased_mnr_loss.1} parent=1 // pred_check
      _
    $region15: #{debiased_mnr_loss.1} parent=1 // pred_check_branch
      %142 = sbr.rel (0) target = $region17
    $region16: #{debiased_mnr_loss.1} parent=1 // pred_region
      %144 = vsyncadd [#allocation3], 0
      %s146 = sshll.u32 %s3, 4
      %s147 = int_to_ptr.hbm [resolvable:$true] %s146
      %149 = dma.smem_to_hbm [#allocation2], 16, %s147, [#allocation3]
    $region17: #{debiased_mnr_loss.1} parent=1 // pred_fallthru
      _
    // Predicated region
    $region18: #{debiased_mnr_loss.1} parent=1 // pred_check
      _
    $region19: #{debiased_mnr_loss.1} parent=1 // pred_check_branch
      %151 = sbr.rel (0) target = $region21
    $region20: #{debiased_mnr_loss.1} parent=1 // pred_region
      %153 = dma.done [#allocation3], 16
    $region21: #{debiased_mnr_loss.1} parent=1 // pred_fallthru
      _
    %154 = sfence
    %155 = vsyncpa [#allocation3], 1

</llo_original>
